<compile_context>
chip_gen: v7x
topology: tpu7x:2x2x1
jax: 0.10.0
libtpu: 0.0.40
codegen_flags: <defaults>
</compile_context>

<pallas_src>
import jax
import jax.numpy as jnp
from jax.experimental import pallas as pl
from jax.experimental.pallas import tpu as pltpu


def _round_up(n, m):
    return ((n + m - 1) // m) * m


def _mlp_kernel(x_ref, w1_ref, b1_ref, w2_ref, b2_ref, o_ref):
    # fc1: (TILE_B, 100) @ (100, 25) -> f32 accumulation on the MXU.
    h = jnp.dot(x_ref[...], w1_ref[...], preferred_element_type=jnp.float32)
    h = h + b1_ref[...]
    # leaky_relu (PyTorch default negative_slope = 0.01): mul + max.
    h = jnp.maximum(h, 0.01 * h)
    # fc2: (TILE_B, 25) @ (25, 2). MXU shape underfill is irrelevant (HBM-bound kernel).
    out = jnp.dot(h, w2_ref[...], preferred_element_type=jnp.float32)
    o_ref[...] = (out + b2_ref[...]).astype(o_ref.dtype)


def label_classifier_forward(x, w1, b1, w2, b2, *, tile_b=32768):
    """x: (B, 100); w1: (25, 100); b1: (25,); w2: (2, 25); b2: (2,).
    Returns (B, 2) in x.dtype, matching the PyTorch module's forward semantics."""
    B, f_in = x.shape
    out_dtype = x.dtype

    # Tiny glue in plain JAX: pre-transpose the weights so the kernel computes
    # y = x @ W + b. Weights/biases are a few KB and stay VMEM-resident.
    w1_t = w1.T.astype(jnp.float32)                  # (100, 25)
    w2_t = w2.T.astype(jnp.float32)                  # (25, 2)
    b1_r = b1.reshape(1, -1).astype(jnp.float32)     # (1, 25)
    b2_r = b2.reshape(1, -1).astype(jnp.float32)     # (1, 2)

    # Batch tiling. tile_b must be a multiple of 8 sublanes; it does NOT need to
    # divide B: the last grid step gets a partial block (OOB input rows are garbage
    # but row-independent; OOB output rows are write-masked by Pallas).
    tile_b = max(8, min(int(tile_b), 32768))         # cap for v7x (64 MiB VMEM/TC)
    tile_b = min(tile_b, _round_up(B, 8))
    tile_b = _round_up(tile_b, 8)
    num_tiles = pl.cdiv(B, tile_b)

    # Scoped-VMEM budget: double-buffered x and out blocks + resident weights + slack.
    # (v5e scoped default is only 16 MiB; v7x physical is 64 MiB, so cap below that.)
    vmem_need = 2 * tile_b * f_in * jnp.dtype(x.dtype).itemsize
    vmem_need += 2 * tile_b * 2 * jnp.dtype(out_dtype).itemsize
    vmem_need += 1 << 20
    vmem_limit = int(min(max(vmem_need + (8 << 20), 16 << 20), 56 << 20))

    resident = lambda shape: pl.BlockSpec(shape, lambda i: (0, 0))

    return pl.pallas_call(
        _mlp_kernel,
        out_shape=jax.ShapeDtypeStruct((B, 2), out_dtype),
        grid=(num_tiles,),
        in_specs=[
            pl.BlockSpec((tile_b, f_in), lambda i: (i, 0)),   # x: streamed per tile
            resident(w1_t.shape),                             # weights/biases resident
            resident(b1_r.shape),
            resident(w2_t.shape),
            resident(b2_r.shape),
        ],
        out_specs=pl.BlockSpec((tile_b, 2), lambda i: (i, 0)),
        compiler_params=pltpu.CompilerParams(
            # Shard batch tiles across both TensorCores on v7x; no-op on v5e/v6e.
            dimension_semantics=("parallel",),
            vmem_limit_bytes=vmem_limit,
        ),
    )(x, w1_t, b1_r, w2_t, b2_r)


def _reference(x, w1, b1, w2, b2):
    # Plain f32 reference mirroring the PyTorch module.
    h = x.astype(jnp.float32) @ w1.T + b1
    h = jnp.where(h > 0, h, 0.01 * h)
    return (h @ w2.T + b2).astype(x.dtype)


if __name__ == "__main__":
    key = jax.random.PRNGKey(0)
    k_x, k_w1, k_b1, k_w2, k_b2 = jax.random.split(key, 5)

    # Small demo shapes; B deliberately NOT a multiple of the tile so the partial
    # last block (masked OOB writes) and a multi-step parallel grid are exercised.
    B = 50
    x = jax.random.normal(k_x, (B, 100), dtype=jnp.float32)

    # Deterministic parameter init (PyTorch-style uniform bounds, synthetic).
    bound1 = 1.0 / (100 ** 0.5)
    w1 = jax.random.uniform(k_w1, (25, 100), jnp.float32, -bound1, bound1)
    b1 = jax.random.uniform(k_b1, (25,), jnp.float32, -bound1, bound1)
    bound2 = 1.0 / (25 ** 0.5)
    w2 = jax.random.uniform(k_w2, (2, 25), jnp.float32, -bound2, bound2)
    b2 = jax.random.uniform(k_b2, (2,), jnp.float32, -bound2, bound2)

    out = label_classifier_forward(x, w1, b1, w2, b2, tile_b=16)  # 4 grid steps
    out = jax.block_until_ready(out)

    ref = _reference(x, w1, b1, w2, b2)
    assert out.shape == (B, 2)
    # Tolerance covers the MXU's default-precision handling of f32 matmuls.
    assert jnp.allclose(out, ref, atol=1e-2, rtol=1e-2), \
        float(jnp.max(jnp.abs(out - ref)))

    print("KERNEL_OK")
</pallas_src>

<mosaic_0001>
module attributes {stable_mosaic.version = 11 : i64} {
  func.func @_mlp_kernel(%arg0: i32, %arg1: memref<16x100xf32, #tpu.memory_space<vmem>>, %arg2: memref<100x25xf32, #tpu.memory_space<vmem>>, %arg3: memref<1x25xf32, #tpu.memory_space<vmem>>, %arg4: memref<25x2xf32, #tpu.memory_space<vmem>>, %arg5: memref<1x2xf32, #tpu.memory_space<vmem>>, %arg6: memref<16x2xf32, #tpu.memory_space<vmem>>) attributes {dimension_semantics = [#tpu.dimension_semantics<parallel>], iteration_bounds = array<i64: 4>, scalar_prefetch = 0 : i64, scratch_operands = 0 : i64, tpu.core_type = #tpu.core_type<tc>, window_params = [{transform_indices = @transform_0, window_bounds = array<i64: 16, 100>}, {pipeline_mode = #tpu.pipeline_mode<synchronous>, transform_indices = @transform_1, window_bounds = array<i64: 100, 25>}, {pipeline_mode = #tpu.pipeline_mode<synchronous>, transform_indices = @transform_2, window_bounds = array<i64: 1, 25>}, {pipeline_mode = #tpu.pipeline_mode<synchronous>, transform_indices = @transform_3, window_bounds = array<i64: 25, 2>}, {pipeline_mode = #tpu.pipeline_mode<synchronous>, transform_indices = @transform_4, window_bounds = array<i64: 1, 2>}, {transform_indices = @transform_5, window_bounds = array<i64: 16, 2>}]} {
    %c0 = arith.constant 0 : index
    %c0_0 = arith.constant 0 : index
    %0 = vector.load %arg1[%c0, %c0_0] : memref<16x100xf32, #tpu.memory_space<vmem>>, vector<16x100xf32>
    %c0_1 = arith.constant 0 : index
    %c0_2 = arith.constant 0 : index
    %1 = vector.load %arg2[%c0_1, %c0_2] : memref<100x25xf32, #tpu.memory_space<vmem>>, vector<100x25xf32>
    %cst = arith.constant dense<0.000000e+00> : vector<16x25xf32>
    %2 = tpu.matmul %0, %1, %cst {dimension_numbers = #tpu.dot_dimension_numbers<[1], [0], [0], [1], [0, 0, 1, 1], [], []>} : vector<16x100xf32>, vector<100x25xf32>, vector<16x25xf32> -> vector<16x25xf32>
    %c0_3 = arith.constant 0 : index
    %c0_4 = arith.constant 0 : index
    %3 = vector.load %arg3[%c0_3, %c0_4] : memref<1x25xf32, #tpu.memory_space<vmem>>, vector<1x25xf32>
    %4 = vector.broadcast %3 : vector<1x25xf32> to vector<16x25xf32>
    %5 = arith.addf %2, %4 : vector<16x25xf32>
    %cst_5 = arith.constant 0.00999999977 : f32
    %6 = vector.broadcast %cst_5 : f32 to vector<16x25xf32>
    %7 = arith.mulf %6, %5 : vector<16x25xf32>
    %8 = arith.maximumf %5, %7 : vector<16x25xf32>
    %c0_6 = arith.constant 0 : index
    %c0_7 = arith.constant 0 : index
    %9 = vector.load %arg4[%c0_6, %c0_7] : memref<25x2xf32, #tpu.memory_space<vmem>>, vector<25x2xf32>
    %cst_8 = arith.constant dense<0.000000e+00> : vector<16x2xf32>
    %10 = tpu.matmul %8, %9, %cst_8 {dimension_numbers = #tpu.dot_dimension_numbers<[1], [0], [0], [1], [0, 0, 1, 1], [], []>} : vector<16x25xf32>, vector<25x2xf32>, vector<16x2xf32> -> vector<16x2xf32>
    %c0_9 = arith.constant 0 : index
    %c0_10 = arith.constant 0 : index
    %11 = vector.load %arg5[%c0_9, %c0_10] : memref<1x2xf32, #tpu.memory_space<vmem>>, vector<1x2xf32>
    %12 = vector.broadcast %11 : vector<1x2xf32> to vector<16x2xf32>
    %13 = arith.addf %10, %12 : vector<16x2xf32>
    %c0_11 = arith.constant 0 : index
    %c0_12 = arith.constant 0 : index
    %14 = vector.load %arg6[%c0_11, %c0_12] : memref<16x2xf32, #tpu.memory_space<vmem>>, vector<16x2xf32>
    tpu.vector_store %arg6[%c0_11, %c0_12], %13 {strides = array<i32>} : memref<16x2xf32, #tpu.memory_space<vmem>>, vector<16x2xf32>,
    return
  }
  func.func @transform_0(%arg0: i32) -> (i32, i32) {
    %c0_i32 = arith.constant 0 : i32
    %c0_i32_0 = arith.constant 0 : i32
    return %arg0, %c0_i32 : i32, i32
  }
  func.func @transform_1(%arg0: i32) -> (i32, i32) {
    %c0_i32 = arith.constant 0 : i32
    %c0_i32_0 = arith.constant 0 : i32
    %c0_i32_1 = arith.constant 0 : i32
    return %c0_i32, %c0_i32_0 : i32, i32
  }
  func.func @transform_2(%arg0: i32) -> (i32, i32) {
    %c0_i32 = arith.constant 0 : i32
    %c0_i32_0 = arith.constant 0 : i32
    %c0_i32_1 = arith.constant 0 : i32
    return %c0_i32, %c0_i32_0 : i32, i32
  }
  func.func @transform_3(%arg0: i32) -> (i32, i32) {
    %c0_i32 = arith.constant 0 : i32
    %c0_i32_0 = arith.constant 0 : i32
    %c0_i32_1 = arith.constant 0 : i32
    return %c0_i32, %c0_i32_0 : i32, i32
  }
  func.func @transform_4(%arg0: i32) -> (i32, i32) {
    %c0_i32 = arith.constant 0 : i32
    %c0_i32_0 = arith.constant 0 : i32
    %c0_i32_1 = arith.constant 0 : i32
    return %c0_i32, %c0_i32_0 : i32, i32
  }
  func.func @transform_5(%arg0: i32) -> (i32, i32) {
    %c0_i32 = arith.constant 0 : i32
    %c0_i32_0 = arith.constant 0 : i32
    return %arg0, %c0_i32 : i32, i32
  }
}

</mosaic_0001>

<llo_original>
// kernel: tpu_custom_call.1
$region0: #{tpu_custom_call.1}
  #allocation0 [shape = 'u32[]', space=smem, size = 0x4, offset = 0x4, fixed_abs, tag = 'smem constant byte address 0x4 - core index']
  #allocation1 [shape = 'u32[144,128]{1,0:T(1,128)}', space=vmem, size = 0x12000, scoped, tag = 'internal scratch']
  %s0 = inlined_call_operand.vmem [shape: f32[50,100], index: 0, kind: input, shape index: {}]
  %s1 = inlined_call_operand.vmem [shape: f32[100,25], index: 1, kind: input, shape index: {}]
  %s2 = inlined_call_operand.vmem [shape: f32[1,25], index: 2, kind: input, shape index: {}]
  %s3 = inlined_call_operand.vmem [shape: f32[25,2], index: 3, kind: input, shape index: {}]
  %s4 = inlined_call_operand.vmem [shape: f32[1,2], index: 4, kind: input, shape index: {}]
  %s5 = inlined_call_operand.vmem [shape: f32[50,2], index: 5, kind: output, shape index: {}]
  %s6 = sld [smem:[#allocation0]]
  $region101: #{tpu_custom_call.1} parent=0
    _
  %s8 = ssub.s32 1, %s6
  %s9 = scalar_select 0, %s8, %s6
  $region1: #{tpu_custom_call.1} parent=0
    #allocation2 [shape = 'u8[16384]{0}', space=vmem, size = 0x4000, scoped, tag = 'output window, operand 0']
    loop: start=0, step=1, limit=6
    $region2: #{tpu_custom_call.1} parent=1 // loop_pre_header
      _
    $region3: #{tpu_custom_call.1} parent=1 // loop_header
      %s11 = sphi 0, %s15
      %p12 = scmp.ge.s32.totalorder %s11, 6
      %s21 = sphi 0, %s23
      %s24 = sphi 0, %s21
      %s25 = sphi 0, %s24
      %s41 = sphi 0, %s25
      %s45 = sphi 0, %s45
      %s47 = sphi 0, %s45
      %s48 = sphi 0, %s47
      %s62 = sphi 0, %s48
      %s66 = sphi 0, %s66
      %s68 = sphi 0, %s66
      %s69 = sphi 0, %s68
      %s83 = sphi 0, %s69
      %s87 = sphi 0, %s87
      %s89 = sphi 0, %s87
      %s90 = sphi 0, %s89
      %s104 = sphi 0, %s90
      %s108 = sphi 0, %s108
      %s110 = sphi 0, %s108
      %s111 = sphi 0, %s110
      %s125 = sphi 0, %s111
      %s131 = sphi 0, %s133
      %s134 = sphi 0, %s131
      %s135 = sphi 0, %s134
      %s151 = sphi 0, %s135
    $region4: #{tpu_custom_call.1} parent=1 // loop_header_branch
      %14 = sbr.rel (%p12) target = $region8
    $region5: #{tpu_custom_call.1} parent=1 // loop_body
      %s16 = ssub.s32 %s11, 1
      %s17 = ssub.s32 %s11, 2
      %s18 = sadd.s32 %s11, 1
      %s19 = ssub.s32 %s11, %s18
      %p20 = scmp.eq.s32.totalorder %s19, 0
      %s22 = sadd.s32 %s21, 1
      %s23 = scalar_select %p20, %s21, %s22
      %p26 = pneg %p20
      %p27 = scmp.eq.s32.totalorder %s11, 3
      %p28 = por %p26, %p27
      %p29 = scmp.ne.s32.totalorder %s21, %s24
      %p30 = scmp.eq.s32.totalorder %s11, 0
      %p31 = por %p29, %p30
      %p32 = scmp.ne.s32.totalorder %s21, %s24
      %p33 = scmp.eq.s32.totalorder %s16, 3
      %p34 = por %p32, %p33
      %p35 = scmp.ne.s32.totalorder %s24, %s25
      %p36 = scmp.eq.s32.totalorder %s16, 0
      %p37 = por %p35, %p36
      %p38 = scmp.ne.s32.totalorder %s24, %s25
      %p39 = scmp.eq.s32.totalorder %s17, 3
      %p40 = por %p38, %p39
      %p42 = scmp.ne.s32.totalorder %s25, %s41
      %p43 = scmp.eq.s32.totalorder %s17, 0
      %p44 = por %p42, %p43
      %s46 = sadd.s32 %s45, 1
      %p49 = scmp.eq.s32.totalorder %s11, 3
      %p50 = scmp.ne.s32.totalorder %s45, %s47
      %p51 = scmp.eq.s32.totalorder %s11, 0
      %p52 = por %p50, %p51
      %p53 = scmp.ne.s32.totalorder %s45, %s47
      %p54 = scmp.eq.s32.totalorder %s16, 3
      %p55 = por %p53, %p54
      %p56 = scmp.ne.s32.totalorder %s47, %s48
      %p57 = scmp.eq.s32.totalorder %s16, 0
      %p58 = por %p56, %p57
      %p59 = scmp.ne.s32.totalorder %s47, %s48
      %p60 = scmp.eq.s32.totalorder %s17, 3
      %p61 = por %p59, %p60
      %p63 = scmp.ne.s32.totalorder %s48, %s62
      %p64 = scmp.eq.s32.totalorder %s17, 0
      %p65 = por %p63, %p64
      %s67 = sadd.s32 %s66, 1
      %p70 = scmp.eq.s32.totalorder %s11, 3
      %p71 = scmp.ne.s32.totalorder %s66, %s68
      %p72 = scmp.eq.s32.totalorder %s11, 0
      %p73 = por %p71, %p72
      %p74 = scmp.ne.s32.totalorder %s66, %s68
      %p75 = scmp.eq.s32.totalorder %s16, 3
      %p76 = por %p74, %p75
      %p77 = scmp.ne.s32.totalorder %s68, %s69
      %p78 = scmp.eq.s32.totalorder %s16, 0
      %p79 = por %p77, %p78
      %p80 = scmp.ne.s32.totalorder %s68, %s69
      %p81 = scmp.eq.s32.totalorder %s17, 3
      %p82 = por %p80, %p81
      %p84 = scmp.ne.s32.totalorder %s69, %s83
      %p85 = scmp.eq.s32.totalorder %s17, 0
      %p86 = por %p84, %p85
      %s88 = sadd.s32 %s87, 1
      %p91 = scmp.eq.s32.totalorder %s11, 3
      %p92 = scmp.ne.s32.totalorder %s87, %s89
      %p93 = scmp.eq.s32.totalorder %s11, 0
      %p94 = por %p92, %p93
      %p95 = scmp.ne.s32.totalorder %s87, %s89
      %p96 = scmp.eq.s32.totalorder %s16, 3
      %p97 = por %p95, %p96
      %p98 = scmp.ne.s32.totalorder %s89, %s90
      %p99 = scmp.eq.s32.totalorder %s16, 0
      %p100 = por %p98, %p99
      %p101 = scmp.ne.s32.totalorder %s89, %s90
      %p102 = scmp.eq.s32.totalorder %s17, 3
      %p103 = por %p101, %p102
      %p105 = scmp.ne.s32.totalorder %s90, %s104
      %p106 = scmp.eq.s32.totalorder %s17, 0
      %p107 = por %p105, %p106
      %s109 = sadd.s32 %s108, 1
      %p112 = scmp.eq.s32.totalorder %s11, 3
      %p113 = scmp.ne.s32.totalorder %s108, %s110
      %p114 = scmp.eq.s32.totalorder %s11, 0
      %p115 = por %p113, %p114
      %p116 = scmp.ne.s32.totalorder %s108, %s110
      %p117 = scmp.eq.s32.totalorder %s16, 3
      %p118 = por %p116, %p117
      %p119 = scmp.ne.s32.totalorder %s110, %s111
      %p120 = scmp.eq.s32.totalorder %s16, 0
      %p121 = por %p119, %p120
      %p122 = scmp.ne.s32.totalorder %s110, %s111
      %p123 = scmp.eq.s32.totalorder %s17, 3
      %p124 = por %p122, %p123
      %p126 = scmp.ne.s32.totalorder %s111, %s125
      %p127 = scmp.eq.s32.totalorder %s17, 0
      %p128 = por %p126, %p127
      %s129 = ssub.s32 %s11, %s18
      %p130 = scmp.eq.s32.totalorder %s129, 0
      %s132 = sadd.s32 %s131, 1
      %s133 = scalar_select %p130, %s131, %s132
      %p136 = pneg %p130
      %p137 = scmp.eq.s32.totalorder %s11, 3
      %p138 = por %p136, %p137
      %p139 = scmp.ne.s32.totalorder %s131, %s134
      %p140 = scmp.eq.s32.totalorder %s11, 0
      %p141 = por %p139, %p140
      %p142 = scmp.ne.s32.totalorder %s131, %s134
      %p143 = scmp.eq.s32.totalorder %s16, 3
      %p144 = por %p142, %p143
      %p145 = scmp.ne.s32.totalorder %s134, %s135
      %p146 = scmp.eq.s32.totalorder %s16, 0
      %p147 = por %p145, %p146
      %p148 = scmp.ne.s32.totalorder %s134, %s135
      %p149 = scmp.eq.s32.totalorder %s17, 3
      %p150 = por %p148, %p149
      %p152 = scmp.ne.s32.totalorder %s135, %s151
      %p153 = scmp.eq.s32.totalorder %s17, 0
      %p154 = por %p152, %p153
      %p155 = scmp.le.s32.totalorder 1, %s11
      %p156 = scmp.lt.s32.totalorder %s11, 5
      %p157 = pnand %p155, %p156
      %p158 = pneg %p157
      // Predicated region
      $region9: #{tpu_custom_call.1} parent=5 // pred_check
        _
      $region10: #{tpu_custom_call.1} parent=5 // pred_check_branch
        %160 = sbr.rel (%p157) target = $region12
      $region11: #{tpu_custom_call.1} parent=5 // pred_region
        %s161 = ssub.s32 %s11, 1
        // Predicated region
        $region13: #{tpu_custom_call.1} parent=11 // pred_check
          %p162 = pneg %p58
        $region14: #{tpu_custom_call.1} parent=11 // pred_check_branch
          %164 = sbr.rel (%p162) target = $region16
        $region15: #{tpu_custom_call.1} parent=11 // pred_region
          _
        $region16: #{tpu_custom_call.1} parent=11 // pred_fallthru
          _
        // Predicated region
        $region17: #{tpu_custom_call.1} parent=11 // pred_check
          %p165 = pneg %p79
        $region18: #{tpu_custom_call.1} parent=11 // pred_check_branch
          %167 = sbr.rel (%p165) target = $region20
        $region19: #{tpu_custom_call.1} parent=11 // pred_region
          _
        $region20: #{tpu_custom_call.1} parent=11 // pred_fallthru
          _
        // Predicated region
        $region21: #{tpu_custom_call.1} parent=11 // pred_check
          %p168 = pneg %p100
        $region22: #{tpu_custom_call.1} parent=11 // pred_check_branch
          %170 = sbr.rel (%p168) target = $region24
        $region23: #{tpu_custom_call.1} parent=11 // pred_region
          _
        $region24: #{tpu_custom_call.1} parent=11 // pred_fallthru
          _
        // Predicated region
        $region25: #{tpu_custom_call.1} parent=11 // pred_check
          %p171 = pneg %p121
        $region26: #{tpu_custom_call.1} parent=11 // pred_check_branch
          %173 = sbr.rel (%p171) target = $region28
        $region27: #{tpu_custom_call.1} parent=11 // pred_region
          _
        $region28: #{tpu_custom_call.1} parent=11 // pred_fallthru
          _
      $region12: #{tpu_custom_call.1} parent=5 // pred_fallthru
        _
      %p174 = scmp.lt.s32.totalorder %s11, 4
      // Predicated region
      $region29: #{tpu_custom_call.1} parent=5 // pred_check
        %p175 = pneg %p174
      $region30: #{tpu_custom_call.1} parent=5 // pred_check_branch
        %177 = sbr.rel (%p175) target = $region32
      $region31: #{tpu_custom_call.1} parent=5 // pred_region
        // Predicated region
        $region33: #{tpu_custom_call.1} parent=31 // pred_check
          %p178 = pneg %p31
        $region34: #{tpu_custom_call.1} parent=31 // pred_check_branch
          %180 = sbr.rel (%p178) target = $region36
        $region35: #{tpu_custom_call.1} parent=31 // pred_region
          %s181 = smul.u32 2, %s11
          %s182 = ssub.s32 7, %s181
          %p183 = scmp.lt.s32.totalorder %s182, 2
          %s184 = scalar_select %p183, %s182, 2
          %s185 = smul.u32 128, %s184
          %p186 = scmp.lt.s32.totalorder %s181, 6
          %s187 = scalar_select %p186, %s181, 6
          %s188 = smul.addr %s187, 8
          %s189 = scalar_lea.vmem %s0, %s188
          %s190 = smul.u32 2, %s11
          %s191 = ssub.s32 7, %s190
          %p192 = scmp.lt.s32.totalorder %s191, 2
          %s193 = scalar_select %p192, %s191, 2
          %s194 = smul.u32 128, %s193
        $region36: #{tpu_custom_call.1} parent=31 // pred_fallthru
          _
      $region32: #{tpu_custom_call.1} parent=5 // pred_fallthru
        _
      %p195 = scmp.le.s32.totalorder 1, %s11
      %p196 = scmp.lt.s32.totalorder %s11, 5
      %p197 = pnand %p195, %p196
      %p198 = pneg %p197
      // Predicated region
      $region37: #{tpu_custom_call.1} parent=5 // pred_check
        _
      $region38: #{tpu_custom_call.1} parent=5 // pred_check_branch
        %200 = sbr.rel (%p197) target = $region40
      $region39: #{tpu_custom_call.1} parent=5 // pred_region
        %s201 = ssub.s32 %s11, 1
        %s202 = smul.u32 2, %s16
        %s203 = ssub.s32 7, %s202
        %p204 = scmp.lt.s32.totalorder %s203, 2
        %s205 = scalar_select %p204, %s203, 2
        %s206 = smul.u32 128, %s205
        %p207 = scmp.lt.s32.totalorder %s202, 6
        %s208 = scalar_select %p207, %s202, 6
        %s209 = smul.addr %s208, 8
        %s210 = scalar_lea.vmem %s0, %s209
        %p211 = pneg %p37
        %p212 = pneg %p34
        %p213 = pneg %p58
        %p214 = pneg %p55
        %p215 = pneg %p79
        %p216 = pneg %p76
        %p217 = pneg %p100
        %p218 = pneg %p97
        %p219 = pneg %p121
        %p220 = pneg %p118
        %p221 = pneg %p147
        %p222 = pneg %p144
        %s223 = sand.u32 %s134, 1
        %s224 = sand.u32 %s134, 1
        %s225 = smul.addr %s224, 16
        %s226 = scalar_lea.vmem [#allocation2], %s225
        %s227 = smul.u32 2, %s16
        %s228 = ssub.s32 7, %s227
        %p229 = scmp.lt.s32.totalorder %s228, 2
        %s230 = scalar_select %p229, %s228, 2
        %s231 = smul.u32 128, %s230
        %p232 = scmp.lt.s32.totalorder %s227, 6
        %s233 = scalar_select %p232, %s227, 6
        %s234 = smul.addr %s233, 8
        %s235 = scalar_lea.vmem %s0, %s234
        %s236 = smul.u32 2, %s16
        %s237 = ssub.s32 7, %s236
        %p238 = scmp.lt.s32.totalorder %s237, 2
        %s239 = scalar_select %p238, %s237, 2
        %s240 = smul.u32 128, %s239
        %s241 = smul.u32 2, %s16
        %s242 = ssub.s32 7, %s241
        %p243 = scmp.lt.s32.totalorder %s242, 2
        %s244 = scalar_select %p243, %s242, 2
        %s245 = smul.u32 128, %s244
        %v246 = vld [vmem:[%s235] sm:$0xff]
        %v247 = vld [vmem:[%s235 + $0x8] sm:$0xff]
        %v248 = vld [vmem:[%s1] sm:$0xff]
        %v249 = vld [vmem:[%s1 + $0x8] sm:$0xff]
        %v250 = vld [vmem:[%s1 + $0x10] sm:$0xff]
        %v251 = vld [vmem:[%s1 + $0x18] sm:$0xff]
        %v252 = vld [vmem:[%s1 + $0x20] sm:$0xff]
        %v253 = vld [vmem:[%s1 + $0x28] sm:$0xff]
        %v254 = vld [vmem:[%s1 + $0x30] sm:$0xff]
        %v255 = vld [vmem:[%s1 + $0x38] sm:$0xff]
        %v256 = vld [vmem:[%s1 + $0x40] sm:$0xff]
        %v257 = vld [vmem:[%s1 + $0x48] sm:$0xff]
        %v258 = vld [vmem:[%s1 + $0x50] sm:$0xff]
        %v259 = vld [vmem:[%s1 + $0x58] sm:$0xff]
        %v260 = vld [vmem:[%s1 + $0x60] sm:$0xf]
        %v261 = vld [vmem:[%s2] sm:$0x1]
        %v263 = vlaneseq
        %v264 = vshrl.u32 %v263, 7
        %v265 = vsub.s32 0, %v264
        %v266 = vrot.slane %v261, %v265
        %vm268 = vcmask 818176
        %v270 = vsel %vm268, %v246, 0
        %v273 = vsel %vm268, %v247, 0
        %vm275 = vcmask 1043456
        %v277 = vsel %vm275, %v260, 0
        %279 = vmatprep.subr.mxu0 0.0
        %280 = vmatpush1.msra.mxu0 %v248
        %281 = vmatprep.subr.mxu0 0.0
        %282 = vmatpush1.msra.mxu0 %v249
        %283 = vmatprep.subr.mxu0 0.0
        %284 = vmatpush1.msra.mxu0 %v250
        %285 = vmatprep.subr.mxu0 0.0
        %286 = vmatpush1.msra.mxu0 %v251
        %287 = vmatprep.subr.mxu0 0.0
        %288 = vmatpush1.msra.mxu0 %v252
        %289 = vmatprep.subr.mxu0 0.0
        %290 = vmatpush1.msra.mxu0 %v253
        %291 = vmatprep.subr.mxu0 0.0
        %292 = vmatpush1.msra.mxu0 %v254
        %293 = vmatprep.subr.mxu0 0.0
        %294 = vmatpush1.msra.mxu0 %v255
        %295 = vmatprep.subr.mxu0 0.0
        %296 = vmatpush1.msra.mxu0 %v256
        %297 = vmatprep.subr.mxu0 0.0
        %298 = vmatpush1.msra.mxu0 %v257
        %299 = vmatprep.subr.mxu0 0.0
        %300 = vmatpush1.msra.mxu0 %v258
        %301 = vmatprep.subr.mxu0 0.0
        %302 = vmatpush1.msra.mxu0 %v259
        %303 = vmatprep.subr.mxu0 0.0
        %304 = vmatpush1.msra.mxu0 %v277
        %305 = vmatprep.subr.mxu0 0.0
        %306 = vmatpush1.msra.mxu0 0.0
        %307 = vmatprep.subr.mxu0 0.0
        %308 = vmatpush1.msra.mxu0 0.0
        %309 = vmatprep.subr.mxu0 0.0
        %310 = vmatpush1.msra.mxu0 0.0
        %311 = vmatprep.subr.mxu0 0.0
        %312 = vmatpush1.msra.mxu0 0.0
        %313 = vmatprep.subr.mxu0 0.0
        %314 = vmatpush1.msra.mxu0 0.0
        %315 = vmatprep.subr.mxu0 0.0
        %316 = vmatpush1.msra.mxu0 0.0
        %317 = vmatprep.subr.mxu0 0.0
        %318 = vmatpush1.msra.mxu0 0.0
        %319 = vmatprep.subr.mxu0 0.0
        %320 = vmatpush1.msra.mxu0 0.0
        %321 = vmatprep.subr.mxu0 0.0
        %322 = vmatpush1.msra.mxu0 0.0
        %323 = vmatprep.subr.mxu0 0.0
        %324 = vmatpush1.msra.mxu0 0.0
        %325 = vmatprep.subr.mxu0 0.0
        %326 = vmatpush1.msra.mxu0 0.0
        %327 = vmatprep.subr.mxu0 0.0
        %328 = vmatpush1.msra.mxu0 0.0
        %329 = vmatprep.subr.mxu0 0.0
        %330 = vmatpush1.msra.mxu0 0.0
        %331 = vmatprep.subr.mxu0 0.0
        %332 = vmatpush1.msra.mxu0 0.0
        %333 = vmatprep.subr.mxu0 0.0
        %334 = vmatpush1.msra.mxu0 0.0
        %335 = vmatprep.subr.mxu0 0.0
        %336 = vmatpush1.msra.mxu0 0.0
        %337 = vmatprep.subr.mxu0 0.0
        %338 = vmatpush1.msra.mxu0 0.0
        %339 = vmatprep.subr.mxu0 0.0
        %340 = vmatpush1.msra.mxu0 0.0
        %341 = vmatprep.subr.mxu0 0.0
        %342 = vmatpush1.msra.mxu0 0.0
        %343 = vmatprep.mubr.f32.mxu0 0.0
        %344 = vmatmul.mubr.f32.gmra.mrb[0].mxu0 %v270
        %v345 = vpop.f32.mrb[0].mxu0
        %v346 = vadd.f32 %v266, %v345
        %v347 = vpop.f32.mrb[0].mxu0
        %348 = vmatprep.mubr.f32.mxu0 0.0
        %349 = vmatmul.mubr.f32.gmra.mrb[0].mxu0 %v273
        %v350 = vpop.f32.mrb[0].mxu0
        %v351 = vadd.f32 %v266, %v350
        %v352 = vpop.f32.mrb[0].mxu0
        %353 = vdwg.mxu0
        %v354 = vmul.f32 %v346, 0.01
        %v355 = vmul.f32 %v351, 0.01
        %v356 = vmax.f32 %v346, %v354
        %v357 = vmax.f32 %v351, %v355
        %v358 = vld [vmem:[%s3] sm:$0xff]
        %v359 = vld [vmem:[%s3 + $0x8] sm:$0xff]
        %v360 = vld [vmem:[%s3 + $0x10] sm:$0xff]
        %v361 = vld [vmem:[%s3 + $0x18] sm:$0x1]
        %v362 = vld [vmem:[%s4] sm:$0x1]
        %v364 = vlaneseq
        %v365 = vshrl.u32 %v364, 7
        %v366 = vsub.s32 0, %v365
        %v367 = vrot.slane %v362, %v366
        %vm369 = vcmask 203776
        %v371 = vsel %vm369, %v356, 0
        %v374 = vsel %vm369, %v357, 0
        %vm376 = vcmask 1040384
        %v378 = vsel %vm376, %v361, 0
        %380 = vmatprep.subr.mxu0 0.0
        %381 = vmatpush1.msra.mxu0 %v358
        %382 = vmatprep.subr.mxu0 0.0
        %383 = vmatpush1.msra.mxu0 %v359
        %384 = vmatprep.subr.mxu0 0.0
        %385 = vmatpush1.msra.mxu0 %v360
        %386 = vmatprep.subr.mxu0 0.0
        %387 = vmatpush1.msra.mxu0 %v378
        %388 = vmatprep.subr.mxu0 0.0
        %389 = vmatpush1.msra.mxu0 0.0
        %390 = vmatprep.subr.mxu0 0.0
        %391 = vmatpush1.msra.mxu0 0.0
        %392 = vmatprep.subr.mxu0 0.0
        %393 = vmatpush1.msra.mxu0 0.0
        %394 = vmatprep.subr.mxu0 0.0
        %395 = vmatpush1.msra.mxu0 0.0
        %396 = vmatprep.subr.mxu0 0.0
        %397 = vmatpush1.msra.mxu0 0.0
        %398 = vmatprep.subr.mxu0 0.0
        %399 = vmatpush1.msra.mxu0 0.0
        %400 = vmatprep.subr.mxu0 0.0
        %401 = vmatpush1.msra.mxu0 0.0
        %402 = vmatprep.subr.mxu0 0.0
        %403 = vmatpush1.msra.mxu0 0.0
        %404 = vmatprep.subr.mxu0 0.0
        %405 = vmatpush1.msra.mxu0 0.0
        %406 = vmatprep.subr.mxu0 0.0
        %407 = vmatpush1.msra.mxu0 0.0
        %408 = vmatprep.subr.mxu0 0.0
        %409 = vmatpush1.msra.mxu0 0.0
        %410 = vmatprep.subr.mxu0 0.0
        %411 = vmatpush1.msra.mxu0 0.0
        %412 = vmatprep.subr.mxu0 0.0
        %413 = vmatpush1.msra.mxu0 0.0
        %414 = vmatprep.subr.mxu0 0.0
        %415 = vmatpush1.msra.mxu0 0.0
        %416 = vmatprep.subr.mxu0 0.0
        %417 = vmatpush1.msra.mxu0 0.0
        %418 = vmatprep.subr.mxu0 0.0
        %419 = vmatpush1.msra.mxu0 0.0
        %420 = vmatprep.subr.mxu0 0.0
        %421 = vmatpush1.msra.mxu0 0.0
        %422 = vmatprep.subr.mxu0 0.0
        %423 = vmatpush1.msra.mxu0 0.0
        %424 = vmatprep.subr.mxu0 0.0
        %425 = vmatpush1.msra.mxu0 0.0
        %426 = vmatprep.subr.mxu0 0.0
        %427 = vmatpush1.msra.mxu0 0.0
        %428 = vmatprep.subr.mxu0 0.0
        %429 = vmatpush1.msra.mxu0 0.0
        %430 = vmatprep.subr.mxu0 0.0
        %431 = vmatpush1.msra.mxu0 0.0
        %432 = vmatprep.subr.mxu0 0.0
        %433 = vmatpush1.msra.mxu0 0.0
        %434 = vmatprep.subr.mxu0 0.0
        %435 = vmatpush1.msra.mxu0 0.0
        %436 = vmatprep.subr.mxu0 0.0
        %437 = vmatpush1.msra.mxu0 0.0
        %438 = vmatprep.subr.mxu0 0.0
        %439 = vmatpush1.msra.mxu0 0.0
        %440 = vmatprep.subr.mxu0 0.0
        %441 = vmatpush1.msra.mxu0 0.0
        %442 = vmatprep.subr.mxu0 0.0
        %443 = vmatpush1.msra.mxu0 0.0
        %444 = vmatprep.mubr.f32.mxu0 0.0
        %445 = vmatmul.mubr.f32.gmra.mrb[0].mxu0 %v371
        %v446 = vpop.f32.mrb[0].mxu0
        %v447 = vadd.f32 %v367, %v446
        %v448 = vpop.f32.mrb[0].mxu0
        %449 = vmatprep.mubr.f32.mxu0 0.0
        %450 = vmatmul.mubr.f32.gmra.mrb[0].mxu0 %v374
        %v451 = vpop.f32.mrb[0].mxu0
        %v452 = vadd.f32 %v367, %v451
        %v453 = vpop.f32.mrb[0].mxu0
        %454 = vdwg.mxu0
        %vm455 = vcmask 15360
        %456 = vst.msk [vmem:[%s226] sm:$0xff] %vm455, %v447
        %457 = vst.msk [vmem:[%s226 + $0x8] sm:$0xff] %vm455, %v452
        %s458 = sand.u32 %s134, 1
        %s459 = sand.u32 %s134, 1
        %s460 = smul.addr %s459, 16
        %s461 = scalar_lea.vmem [#allocation2], %s460
        // Predicated region
        $region41: #{tpu_custom_call.1} parent=39 // pred_check
          %p462 = pneg %p144
        $region42: #{tpu_custom_call.1} parent=39 // pred_check_branch
          %464 = sbr.rel (%p462) target = $region44
        $region43: #{tpu_custom_call.1} parent=39 // pred_region
          %s465 = smul.u32 2, %s16
          %s466 = ssub.s32 7, %s465
          %p467 = scmp.lt.s32.totalorder %s466, 2
          %s468 = scalar_select %p467, %s466, 2
          %s469 = smul.u32 128, %s468
          %p470 = scmp.ne.s32.totalorder 0, %s469
          %s471 = smul.addr %s465, 8
          %s472 = scalar_lea.vmem %s5, %s471
          // Predicated region
          $region45: #{tpu_custom_call.1} parent=43 // pred_check
            %p473 = pneg %p470
          $region46: #{tpu_custom_call.1} parent=43 // pred_check_branch
            %475 = sbr.rel (%p473) target = $region48
          $region47: #{tpu_custom_call.1} parent=43 // pred_region
            // Predicated region
            $region49: #{tpu_custom_call.1} parent=47 // pred_check
              _
            $region50: #{tpu_custom_call.1} parent=47 // pred_check_branch
              %477 = sbr.rel (0) target = $region52
            $region51: #{tpu_custom_call.1} parent=47 // pred_region
              // Predicated region
              $region71: #{tpu_custom_call.1} parent=51 // pred_check
                _
              $region72: #{tpu_custom_call.1} parent=51 // pred_check_branch
                %528 = sbr.rel (0) target = $region74
              $region73: #{tpu_custom_call.1} parent=51 // pred_region
                %s529 = sshrl.u32 %s468, 1
                // While loop
                $region75: #{tpu_custom_call.1} parent=73 // loop_pre_header
                  _
                $region76: #{tpu_custom_call.1} parent=73 // loop_header
                  %s531 = sphi 0, %s533
                  %p532 = scmp.ge.s32.totalorder %s531, %s529
                  %s536 = sphi 0, %s545
                  %s537 = sphi %s461, %s548
                  %s538 = sphi %s472, %s549
                $region77: #{tpu_custom_call.1} parent=73 // loop_header_branch
                  %535 = sbr.rel (%p532) target = $region81
                $region78: #{tpu_custom_call.1} parent=73 // loop_body
                  %v539 = vld [vmem:[%s537] sm:$0xff]
                  %540 = vst [vmem:[%s538] sm:$0xff] %v539
                  %v541 = vld [vmem:[%s537 + $0x8] sm:$0xff]
                  %542 = vst [vmem:[%s538 + $0x8] sm:$0xff] %v541
                  %s543 = sadd.s32 1, %s536
                  %p544 = scmp.ge.s32.totalorder %s543, %s529
                  %s545 = scalar_select %p544, 0, %s543
                  %s546 = smul.u32 %s545, 16
                  %s547 = smul.u32 %s545, 16
                  %s548 = scalar_lea.vmem %s461, %s546 [#allocation2]
                  %s549 = scalar_lea.vmem %s472, %s547
                $region79: #{tpu_custom_call.1} parent=73 // loop_footer
                  %s533 = sadd.s32 %s531, 1
                $region80: #{tpu_custom_call.1} parent=73 // loop_footer_branch
                  %530 = sbr.rel target = $region76
                $region81: #{tpu_custom_call.1} parent=73 // loop_exit
                  _
                %s550 = sshrl.u32 %s468, 1
                %s551 = sand.u32 %s468, 1
                %s552 = smul.u32 %s550, 2
                %s553 = smul.u32 8, %s552
                %s554 = scalar_lea.vmem %s461, %s553 [#allocation2]
                %s555 = smul.u32 8, %s552
                %s556 = scalar_lea.vmem %s472, %s555
                // While loop
                $region82: #{tpu_custom_call.1} parent=73 // loop_pre_header
                  _
                $region83: #{tpu_custom_call.1} parent=73 // loop_header
                  %s558 = sphi 0, %s560
                  %p559 = scmp.ge.s32.totalorder %s558, %s551
                  %s563 = sphi 0, %s570
                  %s564 = sphi %s554, %s573
                  %s565 = sphi %s556, %s574
                $region84: #{tpu_custom_call.1} parent=73 // loop_header_branch
                  %562 = sbr.rel (%p559) target = $region88
                $region85: #{tpu_custom_call.1} parent=73 // loop_body
                  %v566 = vld [vmem:[%s564] sm:$0xff]
                  %567 = vst [vmem:[%s565] sm:$0xff] %v566
                  %s568 = sadd.s32 1, %s563
                  %p569 = scmp.ge.s32.totalorder %s568, %s551
                  %s570 = scalar_select %p569, 0, %s568
                  %s571 = smul.u32 %s570, 8
                  %s572 = smul.u32 %s570, 8
                  %s573 = scalar_lea.vmem %s554, %s571 [#allocation2]
                  %s574 = scalar_lea.vmem %s556, %s572
                $region86: #{tpu_custom_call.1} parent=73 // loop_footer
                  %s560 = sadd.s32 %s558, 1
                $region87: #{tpu_custom_call.1} parent=73 // loop_footer_branch
                  %557 = sbr.rel target = $region83
                $region88: #{tpu_custom_call.1} parent=73 // loop_exit
                  _
              $region74: #{tpu_custom_call.1} parent=51 // pred_fallthru
                _
              // Predicated region
              $region89: #{tpu_custom_call.1} parent=51 // pred_check
                _
              $region90: #{tpu_custom_call.1} parent=51 // pred_check_branch
                %576 = sbr.rel target = $region92
              $region91: #{tpu_custom_call.1} parent=51 // pred_region
                _
              $region92: #{tpu_custom_call.1} parent=51 // pred_fallthru
                _
            $region52: #{tpu_custom_call.1} parent=47 // pred_fallthru
              _
            // Predicated region
            $region53: #{tpu_custom_call.1} parent=47 // pred_check
              _
            $region54: #{tpu_custom_call.1} parent=47 // pred_check_branch
              %479 = sbr.rel target = $region56
            $region55: #{tpu_custom_call.1} parent=47 // pred_region
              %s481 = sshrl.u32 %s468, 1
              // While loop
              $region57: #{tpu_custom_call.1} parent=55 // loop_pre_header
                _
              $region58: #{tpu_custom_call.1} parent=55 // loop_header
                %s483 = sphi 0, %s485
                %p484 = scmp.ge.s32.totalorder %s483, %s481
                %s488 = sphi 0, %s497
                %s489 = sphi %s461, %s500
                %s490 = sphi %s472, %s501
              $region59: #{tpu_custom_call.1} parent=55 // loop_header_branch
                %487 = sbr.rel (%p484) target = $region63
              $region60: #{tpu_custom_call.1} parent=55 // loop_body
                %v491 = vld [vmem:[%s489] sm:$0xff]
                %492 = vst [vmem:[%s490] sm:$0xff] %v491
                %v493 = vld [vmem:[%s489 + $0x8] sm:$0xff]
                %494 = vst [vmem:[%s490 + $0x8] sm:$0xff] %v493
                %s495 = sadd.s32 1, %s488
                %p496 = scmp.ge.s32.totalorder %s495, %s481
                %s497 = scalar_select %p496, 0, %s495
                %s498 = smul.u32 %s497, 16
                %s499 = smul.u32 %s497, 16
                %s500 = scalar_lea.vmem %s461, %s498 [#allocation2]
                %s501 = scalar_lea.vmem %s472, %s499
              $region61: #{tpu_custom_call.1} parent=55 // loop_footer
                %s485 = sadd.s32 %s483, 1
              $region62: #{tpu_custom_call.1} parent=55 // loop_footer_branch
                %482 = sbr.rel target = $region58
              $region63: #{tpu_custom_call.1} parent=55 // loop_exit
                _
              %s502 = sshrl.u32 %s468, 1
              %s503 = sand.u32 %s468, 1
              %s504 = smul.u32 %s502, 2
              %s505 = smul.u32 8, %s504
              %s506 = scalar_lea.vmem %s461, %s505 [#allocation2]
              %s507 = smul.u32 8, %s504
              %s508 = scalar_lea.vmem %s472, %s507
              // While loop
              $region64: #{tpu_custom_call.1} parent=55 // loop_pre_header
                _
              $region65: #{tpu_custom_call.1} parent=55 // loop_header
                %s510 = sphi 0, %s512
                %p511 = scmp.ge.s32.totalorder %s510, %s503
                %s515 = sphi 0, %s522
                %s516 = sphi %s506, %s525
                %s517 = sphi %s508, %s526
              $region66: #{tpu_custom_call.1} parent=55 // loop_header_branch
                %514 = sbr.rel (%p511) target = $region70
              $region67: #{tpu_custom_call.1} parent=55 // loop_body
                %v518 = vld [vmem:[%s516] sm:$0xff]
                %519 = vst [vmem:[%s517] sm:$0xff] %v518
                %s520 = sadd.s32 1, %s515
                %p521 = scmp.ge.s32.totalorder %s520, %s503
                %s522 = scalar_select %p521, 0, %s520
                %s523 = smul.u32 %s522, 8
                %s524 = smul.u32 %s522, 8
                %s525 = scalar_lea.vmem %s506, %s523 [#allocation2]
                %s526 = scalar_lea.vmem %s508, %s524
              $region68: #{tpu_custom_call.1} parent=55 // loop_footer
                %s512 = sadd.s32 %s510, 1
              $region69: #{tpu_custom_call.1} parent=55 // loop_footer_branch
                %509 = sbr.rel target = $region65
              $region70: #{tpu_custom_call.1} parent=55 // loop_exit
                _
            $region56: #{tpu_custom_call.1} parent=47 // pred_fallthru
              _
          $region48: #{tpu_custom_call.1} parent=43 // pred_fallthru
            _
          %577 = vnop
        $region44: #{tpu_custom_call.1} parent=39 // pred_fallthru
          _
      $region40: #{tpu_custom_call.1} parent=5 // pred_fallthru
        _
      %p578 = scmp.le.s32.totalorder 2, %s11
      // Predicated region
      $region93: #{tpu_custom_call.1} parent=5 // pred_check
        %p579 = pneg %p578
      $region94: #{tpu_custom_call.1} parent=5 // pred_check_branch
        %581 = sbr.rel (%p579) target = $region96
      $region95: #{tpu_custom_call.1} parent=5 // pred_region
        %s582 = ssub.s32 %s11, 2
        // Predicated region
        $region97: #{tpu_custom_call.1} parent=95 // pred_check
          %p583 = pneg %p150
        $region98: #{tpu_custom_call.1} parent=95 // pred_check_branch
          %585 = sbr.rel (%p583) target = $region100
        $region99: #{tpu_custom_call.1} parent=95 // pred_region
          %s586 = sand.u32 %s135, 1
          %s587 = sand.u32 %s135, 1
          %s588 = smul.addr %s587, 16
          %s589 = scalar_lea.vmem [#allocation2], %s588
        $region100: #{tpu_custom_call.1} parent=95 // pred_fallthru
          _
      $region96: #{tpu_custom_call.1} parent=5 // pred_fallthru
        _
    $region6: #{tpu_custom_call.1} parent=1 // loop_footer
      %s15 = sadd.s32 1, %s11
    $region7: #{tpu_custom_call.1} parent=1 // loop_footer_branch
      %10 = sbr.rel target = $region3
    $region8: #{tpu_custom_call.1} parent=1 // loop_exit
      _

</llo_original>
